<compile_context>
chip_gen: v7x
topology: tpu7x:2x2x1
jax: 0.10.0
libtpu: 0.0.40
codegen_flags: <defaults>
</compile_context>

<pallas_src>
import functools

import jax
import jax.numpy as jnp
from jax.experimental import pallas as pl
from jax.experimental.pallas import tpu as pltpu


def _round_up(x, m):
    return ((x + m - 1) // m) * m


def _vmem_capacity_bytes():
    """Per-core VMEM capacity; conservative fallback if the query fails."""
    try:
        return int(pltpu.get_tpu_info().vmem_capacity_bytes)
    except Exception:
        return 64 * 1024 * 1024          # v7x per-TensorCore size (smallest gen)


def _per_sample_vmem_bytes(C, preds_itemsize, preds_buffers):
    """Conservative VMEM bytes per sample-column of a (C, block_n) tile.

    Accounts for sublane padding of the tiny class axis (f32 -> 8 rows,
    bf16 -> 16, int8 -> 32), the int8 label row (pads to 32 sublanes), the
    f32 accumulator row (pads to 8 sublanes), and ~10 full-tile f32
    temporaries the kernel body materialises (x, shifted, exps, logsoft,
    softmax, onehot, one_minus, w, loss_elem, masks).
    """
    c_pad_in = _round_up(C, max(8, 32 // preds_itemsize))
    c_pad_f32 = _round_up(C, 8)
    return (preds_buffers * c_pad_in * preds_itemsize   # preds multi-buffer
            + 2 * 32 * 1                                # int8 labels, double buffered
            + 8 * 4                                     # (1, bn) f32 accumulator
            + 10 * c_pad_f32 * 4)                       # compiler temporaries headroom


def _focal_kernel(preds_ref, labels_ref, alpha_ref, out_ref, acc_ref, *,
                  gamma, n_valid, block_n, steps_per_split):
    p = pl.program_id(0)
    t = pl.program_id(1)

    @pl.when(t == 0)
    def _():
        acc_ref[...] = jnp.zeros_like(acc_ref)

    # Ragged-tail mask.  There is no wrapper-side padding, so columns at or
    # past n_valid (partial last block / clamped duplicate blocks) must be
    # zeroed BEFORE exp so garbage bytes cannot turn into inf/NaN, and their
    # loss contribution must be exactly zero.
    col0 = (p * steps_per_split + t) * block_n
    lane = jax.lax.broadcasted_iota(jnp.int32, (1, block_n), 1)
    valid = (col0 + lane) < n_valid                                   # (1, TN)

    x = jnp.where(valid, preds_ref[...].astype(jnp.float32), 0.0)     # (C, TN)
    lbl = labels_ref[...].astype(jnp.int32)                           # (1, TN)
    a_col = alpha_ref[...]                                            # (C, 1)

    # log-softmax over the class (sublane) axis.
    x_max = jnp.max(x, axis=0, keepdims=True)
    shifted = x - x_max
    exps = jnp.exp(shifted)
    sumexp = jnp.sum(exps, axis=0, keepdims=True)
    logsoft = shifted - jnp.log(sumexp)
    softmax = exps * (1.0 / sumexp)   # HBM-bound: exact divide; approx not needed

    # One-hot select at the label.  Labels outside [0, C) select nothing and
    # contribute exactly zero (the PyTorch gather would clamp instead; the two
    # only differ on invalid input).
    class_ids = jax.lax.broadcasted_iota(jnp.int32, x.shape, 0)
    onehot = (class_ids == lbl).astype(jnp.float32)

    # Focal weight.  Clamp (1 - p) at 0 so rounding (softmax slightly > 1)
    # can never feed a negative base into a fractional power (NaN).
    one_minus = jnp.maximum(1.0 - softmax, 0.0)
    g = float(gamma)
    if g.is_integer() and 0 <= g <= 8:
        gi = int(g)
        if gi == 0:
            w = jnp.ones_like(one_minus)
        else:
            w = one_minus
            for _ in range(gi - 1):      # integer gamma -> pure VPU multiplies
                w = w * one_minus
    else:
        w = jnp.power(one_minus, jnp.float32(g))

    # Fused masked term; single reduction over the tiny class axis.
    loss_elem = a_col * w * logsoft * onehot                          # (C, TN)
    loss_row = jnp.sum(loss_elem, axis=0, keepdims=True)
    loss_row = jnp.where(valid, loss_row, 0.0)
    acc_ref[...] = acc_ref[...] - loss_row          # loss = -(alpha * w * logp)

    @pl.when(t == pl.num_programs(1) - 1)
    def _():
        out_ref[0, 0] = jnp.sum(acc_ref[...])


def focal_loss_pallas(preds, labels, alpha, *, gamma=2.0, size_average=False,
                      block_n=None, n_split=2, preds_buffers=2):
    """Pallas TPU focal loss.

    preds:  (..., C) float (any float dtype; kept native in HBM)
    labels: (...)    int, values in [0, C)
    alpha:  (C,)     float
    Returns a scalar (sum over samples, or mean if size_average).
    """
    C = preds.shape[-1]
    preds2 = preds.reshape(-1, C)                       # native dtype in HBM
    N = preds2.shape[0]
    itemsize = jnp.dtype(preds2.dtype).itemsize

    # Labels as a lane-dense int8 row when C allows it: with bf16 preds,
    # int32 labels would be ~40% of the kernel's HBM bytes.
    # TODO(synk): have the upstream producer emit int8 labels directly so this
    # cast (one small extra pass over labels) disappears.
    lbl_dtype = jnp.int8 if C <= 127 else jnp.int32
    labels_row = labels.reshape(1, -1).astype(lbl_dtype)

    vmem_cap = _vmem_capacity_bytes()
    per_n = _per_sample_vmem_bytes(C, itemsize, preds_buffers)

    if block_n is None:
        # Several MB of DMA per grid step to amortise per-step overhead, sized
        # from the real (sublane-padded) footprint and the generation's VMEM.
        budget = min(vmem_cap // 2, 56 * 1024 * 1024)
        block_n = (budget // per_n) // 128 * 128
        block_n = max(128, min(block_n, 128 * 1024))
    else:
        block_n = _round_up(max(block_n, 128), 128)
    block_n = min(block_n, _round_up(N, 128))           # don't over-tile tiny N

    num_blocks = pl.cdiv(N, block_n)
    n_split = max(1, min(n_split, num_blocks))
    steps_per_split = pl.cdiv(num_blocks, n_split)
    grid = (n_split, steps_per_split)
    max_block = num_blocks - 1

    # Clamp so a flat step past the last real block re-reads (and fully masks)
    # the last block instead of indexing a fully out-of-bounds block.
    def data_map(p, t):
        return (0, jnp.minimum(p * steps_per_split + t, max_block))

    preds_t = preds2.T                                  # (C, N) lane-dense
    # TODO(synk): if the upstream logits producer can emit (C, N) directly,
    # this transpose copy (one extra HBM pass over preds) disappears.
    alpha_col = alpha.reshape(C, 1).astype(jnp.float32)

    est_vmem = per_n * block_n + 256 * 1024
    vmem_limit = int(min(int(0.75 * vmem_cap),
                         max(8 * 1024 * 1024, int(est_vmem * 1.25))))

    preds_spec = pl.BlockSpec((C, block_n), data_map)
    if preds_buffers != 2:
        # e.g. 3 on v7x if a profile shows exposed DMA-issue latency.
        preds_spec = pl.BlockSpec((C, block_n), data_map,
                                  pipeline_mode=pl.Buffered(preds_buffers))

    out = pl.pallas_call(
        functools.partial(_focal_kernel, gamma=gamma, n_valid=N,
                          block_n=block_n, steps_per_split=steps_per_split),
        out_shape=jax.ShapeDtypeStruct((n_split, 1), jnp.float32),
        grid_spec=pltpu.PrefetchScalarGridSpec(
            num_scalar_prefetch=0,
            grid=grid,
            in_specs=[
                preds_spec,
                pl.BlockSpec((1, block_n), data_map),
                pl.BlockSpec((C, 1), lambda p, t: (0, 0)),
            ],
            out_specs=pl.BlockSpec((1, 1), lambda p, t: (p, 0),
                                   memory_space=pltpu.MemorySpace.SMEM),
            scratch_shapes=[pltpu.VMEM((1, block_n), jnp.float32)],
        ),
        compiler_params=pltpu.CompilerParams(
            # Leading split axis is "parallel" so v7x can shard it across both
            # TensorCores; it is clamped to num_blocks so it is free on 1-TC
            # chips.  TODO(synk): switch to pltpu.CORE_PARALLEL if a v7x
            # profile shows one TensorCore idle.
            dimension_semantics=("parallel", "arbitrary"),
            vmem_limit_bytes=vmem_limit),
    )(preds_t, labels_row, alpha_col)

    loss = jnp.sum(out)
    if size_average:
        loss = loss / N
    return loss


def focal_loss_ref(preds, labels, alpha, *, gamma=2.0, size_average=False):
    """Pure-JAX reference matching the PyTorch module semantics."""
    C = preds.shape[-1]
    preds2 = preds.reshape(-1, C).astype(jnp.float32)
    logsoft = jax.nn.log_softmax(preds2, axis=1)
    soft = jnp.exp(logsoft)
    lbl = labels.reshape(-1)
    idx = jnp.arange(lbl.shape[0])
    p_t = soft[idx, lbl]
    logp_t = logsoft[idx, lbl]
    a_t = alpha[lbl]
    loss = -a_t * (1.0 - p_t) ** gamma * logp_t
    return jnp.mean(loss) if size_average else jnp.sum(loss)


if __name__ == "__main__":
    # Module __init__ defaults: alpha=0.25 (scalar), gamma=2, num_classes=3,
    # size_average=False  ->  alpha vector = [0.25, 0.75, 0.75]
    num_classes = 3
    gamma = 2.0
    alpha = jnp.zeros((num_classes,), jnp.float32)
    alpha = alpha.at[0].add(0.25)
    alpha = alpha.at[1:].add(1.0 - 0.25)

    key = jax.random.PRNGKey(0)
    k1, k2, k3, k4 = jax.random.split(key, 4)

    # Test 1: shapes implied by the module defaults (batch=2, seq=4, C=3).
    preds = jax.random.normal(k1, (2, 4, num_classes), dtype=jnp.float32)
    labels = jax.random.randint(k2, (2, 4), 0, num_classes, dtype=jnp.int32)
    loss = jax.block_until_ready(
        focal_loss_pallas(preds, labels, alpha, gamma=gamma, size_average=False))
    ref = focal_loss_ref(preds, labels, alpha, gamma=gamma, size_average=False)
    assert jnp.allclose(loss, ref, rtol=1e-5, atol=1e-4), (loss, ref)

    # Test 2: ragged tail + multi-step accumulation across both grid axes
    # (N=600, block_n=256 -> 3 real blocks over a (2, 2) grid with one
    # clamped, fully-masked duplicate step), size_average=True.
    preds2 = jax.random.normal(k3, (2, 300, num_classes), dtype=jnp.float32)
    labels2 = jax.random.randint(k4, (2, 300), 0, num_classes, dtype=jnp.int32)
    loss2 = jax.block_until_ready(
        focal_loss_pallas(preds2, labels2, alpha, gamma=gamma,
                          size_average=True, block_n=256))
    ref2 = focal_loss_ref(preds2, labels2, alpha, gamma=gamma, size_average=True)
    assert jnp.allclose(loss2, ref2, rtol=1e-5, atol=1e-4), (loss2, ref2)

    # Test 3: native bf16 logits stay bf16 in HBM; f32 upcast happens in-kernel.
    preds3 = jax.random.normal(k3, (2, 300, num_classes), dtype=jnp.bfloat16)
    loss3 = jax.block_until_ready(
        focal_loss_pallas(preds3, labels2, alpha, gamma=gamma, size_average=False))
    ref3 = focal_loss_ref(preds3, labels2, alpha, gamma=gamma, size_average=False)
    assert jnp.allclose(loss3, ref3, rtol=1e-4, atol=1e-3), (loss3, ref3)

    print("KERNEL_OK")
</pallas_src>

<mosaic_0001>
module attributes {stable_mosaic.version = 11 : i64} {
  func.func @_focal_kernel(%arg0: i32, %arg1: i32, %arg2: memref<3x128xf32, #tpu.memory_space<vmem>>, %arg3: memref<1x128xi8, #tpu.memory_space<vmem>>, %arg4: memref<3x1xf32, #tpu.memory_space<vmem>>, %arg5: memref<1x1xf32, #tpu.memory_space<smem>>, %arg6: memref<1x128xf32, #tpu.memory_space<vmem>>) attributes {dimension_semantics = [#tpu.dimension_semantics<parallel>, #tpu.dimension_semantics<arbitrary>], iteration_bounds = array<i64: 1, 1>, scalar_prefetch = 0 : i64, scratch_operands = 1 : i64, tpu.core_type = #tpu.core_type<tc>, window_params = [{transform_indices = @transform_0, window_bounds = array<i64: 3, 128>}, {transform_indices = @transform_1, window_bounds = array<i64: 1, 128>}, {pipeline_mode = #tpu.pipeline_mode<synchronous>, transform_indices = @transform_2, window_bounds = array<i64: 3, 1>}, {transform_indices = @transform_3, window_bounds = array<i64: 1, 1>}]} {
    %c0_i32 = arith.constant 0 : i32
    %0 = arith.cmpi eq, %arg1, %c0_i32 : i32
    %1 = arith.extui %0 : i1 to i32
    %c0_i32_0 = arith.constant 0 : i32
    %2 = arith.cmpi ne, %1, %c0_i32_0 : i32
    scf.if %2 {
      %cst_19 = arith.constant 0.000000e+00 : f32
      %57 = vector.broadcast %cst_19 : f32 to vector<1x128xf32>
      %c0_20 = arith.constant 0 : index
      %c0_21 = arith.constant 0 : index
      %58 = vector.load %arg6[%c0_20, %c0_21] : memref<1x128xf32, #tpu.memory_space<vmem>>, vector<1x128xf32>
      tpu.vector_store %arg6[%c0_20, %c0_21], %57 {strides = array<i32>} : memref<1x128xf32, #tpu.memory_space<vmem>>, vector<1x128xf32>,
    } else {
    }
    %c1_i32 = arith.constant 1 : i32
    %3 = arith.muli %arg0, %c1_i32 : i32
    %4 = arith.addi %3, %arg1 : i32
    %c128_i32 = arith.constant 128 : i32
    %5 = arith.muli %4, %c128_i32 : i32
    %6 = tpu.iota {dimensions = array<i32: 1>} : vector<1x128xi32>
    %7 = vector.broadcast %5 : i32 to vector<1x128xi32>
    %8 = arith.addi %7, %6 : vector<1x128xi32>
    %c8_i32 = arith.constant 8 : i32
    %9 = vector.broadcast %c8_i32 : i32 to vector<1x128xi32>
    %10 = arith.cmpi slt, %8, %9 : vector<1x128xi32>
    %c0 = arith.constant 0 : index
    %c0_1 = arith.constant 0 : index
    %11 = vector.load %arg2[%c0, %c0_1] : memref<3x128xf32, #tpu.memory_space<vmem>>, vector<3x128xf32>
    %cst = arith.constant 0.000000e+00 : f32
    %12 = vector.shape_cast %10 : vector<1x128xi1> to vector<1x128xi1>
    %13 = vector.broadcast %12 : vector<1x128xi1> to vector<3x128xi1>
    %14 = vector.broadcast %cst : f32 to vector<3x128xf32>
    %15 = arith.select %13, %11, %14 : vector<3x128xi1>, vector<3x128xf32>
    %c0_2 = arith.constant 0 : index
    %c0_3 = arith.constant 0 : index
    %16 = vector.load %arg3[%c0_2, %c0_3] : memref<1x128xi8, #tpu.memory_space<vmem>>, vector<1x128xi8>
    %17 = arith.extsi %16 : vector<1x128xi8> to vector<1x128xi32>
    %c0_4 = arith.constant 0 : index
    %c0_5 = arith.constant 0 : index
    %18 = vector.load %arg4[%c0_4, %c0_5] : memref<3x1xf32, #tpu.memory_space<vmem>>, vector<3x1xf32>
    %cst_6 = arith.constant dense<0xFF800000> : vector<128xf32>
    %19 = vector.multi_reduction <maximumf>, %15, %cst_6 [0] : vector<3x128xf32> to vector<128xf32>
    %20 = vector.shape_cast %19 : vector<128xf32> to vector<1x128xf32>
    %21 = vector.broadcast %20 : vector<1x128xf32> to vector<3x128xf32>
    %22 = arith.subf %15, %21 : vector<3x128xf32>
    %23 = math.exp %22 : vector<3x128xf32>
    %cst_7 = arith.constant dense<0.000000e+00> : vector<128xf32>
    %24 = vector.multi_reduction <add>, %23, %cst_7 [0] : vector<3x128xf32> to vector<128xf32>
    %25 = vector.shape_cast %24 : vector<128xf32> to vector<1x128xf32>
    %26 = math.log %25 : vector<1x128xf32>
    %27 = vector.broadcast %26 : vector<1x128xf32> to vector<3x128xf32>
    %28 = arith.subf %22, %27 : vector<3x128xf32>
    %cst_8 = arith.constant 1.000000e+00 : f32
    %29 = vector.broadcast %cst_8 : f32 to vector<1x128xf32>
    %30 = arith.divf %29, %25 : vector<1x128xf32>
    %31 = vector.broadcast %30 : vector<1x128xf32> to vector<3x128xf32>
    %32 = arith.mulf %23, %31 : vector<3x128xf32>
    %33 = tpu.iota {dimensions = array<i32: 0>} : vector<3x128xi32>
    %34 = vector.broadcast %17 : vector<1x128xi32> to vector<3x128xi32>
    %35 = arith.cmpi eq, %33, %34 : vector<3x128xi32>
    %36 = arith.extui %35 : vector<3x128xi1> to vector<3x128xi32>
    %37 = arith.sitofp %36 : vector<3x128xi32> to vector<3x128xf32>
    %cst_9 = arith.constant 1.000000e+00 : f32
    %38 = vector.broadcast %cst_9 : f32 to vector<3x128xf32>
    %39 = arith.subf %38, %32 : vector<3x128xf32>
    %cst_10 = arith.constant 0.000000e+00 : f32
    %40 = vector.broadcast %cst_10 : f32 to vector<3x128xf32>
    %41 = arith.maximumf %39, %40 : vector<3x128xf32>
    %42 = arith.mulf %41, %41 : vector<3x128xf32>
    %43 = vector.broadcast %18 : vector<3x1xf32> to vector<3x128xf32>
    %44 = arith.mulf %43, %42 : vector<3x128xf32>
    %45 = arith.mulf %44, %28 : vector<3x128xf32>
    %46 = arith.mulf %45, %37 : vector<3x128xf32>
    %cst_11 = arith.constant dense<0.000000e+00> : vector<128xf32>
    %47 = vector.multi_reduction <add>, %46, %cst_11 [0] : vector<3x128xf32> to vector<128xf32>
    %48 = vector.shape_cast %47 : vector<128xf32> to vector<1x128xf32>
    %cst_12 = arith.constant 0.000000e+00 : f32
    %49 = vector.broadcast %cst_12 : f32 to vector<1x128xf32>
    %50 = arith.select %10, %48, %49 : vector<1x128xi1>, vector<1x128xf32>
    %c0_13 = arith.constant 0 : index
    %c0_14 = arith.constant 0 : index
    %51 = vector.load %arg6[%c0_13, %c0_14] : memref<1x128xf32, #tpu.memory_space<vmem>>, vector<1x128xf32>
    %52 = arith.subf %51, %50 : vector<1x128xf32>
    %c0_15 = arith.constant 0 : index
    %c0_16 = arith.constant 0 : index
    %53 = vector.load %arg6[%c0_15, %c0_16] : memref<1x128xf32, #tpu.memory_space<vmem>>, vector<1x128xf32>
    tpu.vector_store %arg6[%c0_15, %c0_16], %52 {strides = array<i32>} : memref<1x128xf32, #tpu.memory_space<vmem>>, vector<1x128xf32>,
    %c0_i32_17 = arith.constant 0 : i32
    %54 = arith.cmpi eq, %arg1, %c0_i32_17 : i32
    %55 = arith.extui %54 : i1 to i32
    %c0_i32_18 = arith.constant 0 : i32
    %56 = arith.cmpi ne, %55, %c0_i32_18 : i32
    scf.if %56 {
      %c0_19 = arith.constant 0 : index
      %c0_20 = arith.constant 0 : index
      %57 = vector.load %arg6[%c0_19, %c0_20] : memref<1x128xf32, #tpu.memory_space<vmem>>, vector<1x128xf32>
      %58 = vector.shape_cast %57 : vector<1x128xf32> to vector<1x1x128xf32>
      %cst_21 = arith.constant dense<0.000000e+00> : vector<1xf32>
      %59 = vector.multi_reduction <add>, %58, %cst_21 [1, 2] : vector<1x1x128xf32> to vector<1xf32>
      %60 = vector.shape_cast %59 : vector<1xf32> to vector<1x1x1xf32>
      %61 = vector.extract %60[0, 0, 0] : f32 from vector<1x1x1xf32>
      %c0_22 = arith.constant 0 : index
      %c0_23 = arith.constant 0 : index
      %62 = memref.load %arg5[%c0_22, %c0_23] : memref<1x1xf32, #tpu.memory_space<smem>>
      memref.store %61, %arg5[%c0_22, %c0_23] : memref<1x1xf32, #tpu.memory_space<smem>>
    } else {
    }
    return
  }
  func.func @transform_0(%arg0: i32, %arg1: i32) -> (i32, i32) {
    %c1_i32 = arith.constant 1 : i32
    %0 = arith.muli %arg0, %c1_i32 : i32
    %1 = arith.addi %0, %arg1 : i32
    %c0_i32 = arith.constant 0 : i32
    %2 = arith.minsi %1, %c0_i32 : i32
    %c0_i32_0 = arith.constant 0 : i32
    %c0_i32_1 = arith.constant 0 : i32
    return %c0_i32_0, %2 : i32, i32
  }
  func.func @transform_1(%arg0: i32, %arg1: i32) -> (i32, i32) {
    %c1_i32 = arith.constant 1 : i32
    %0 = arith.muli %arg0, %c1_i32 : i32
    %1 = arith.addi %0, %arg1 : i32
    %c0_i32 = arith.constant 0 : i32
    %2 = arith.minsi %1, %c0_i32 : i32
    %c0_i32_0 = arith.constant 0 : i32
    %c0_i32_1 = arith.constant 0 : i32
    return %c0_i32_0, %2 : i32, i32
  }
  func.func @transform_2(%arg0: i32, %arg1: i32) -> (i32, i32) {
    %c0_i32 = arith.constant 0 : i32
    %c0_i32_0 = arith.constant 0 : i32
    %c0_i32_1 = arith.constant 0 : i32
    return %c0_i32, %c0_i32_0 : i32, i32
  }
  func.func @transform_3(%arg0: i32, %arg1: i32) -> (i32, i32) {
    %c0_i32 = arith.constant 0 : i32
    %c0_i32_0 = arith.constant 0 : i32
    return %arg0, %c0_i32 : i32, i32
  }
}

</mosaic_0001>

<llo_original>
// kernel: tpu_custom_call.1
$region0: #{tpu_custom_call.1}
  #allocation0 [shape = 'u32[]', space=smem, size = 0x4, offset = 0x4, fixed_abs, tag = 'smem constant byte address 0x4 - core index']
  #allocation1 [shape = 'u32[144,128]{1,0:T(1,128)}', space=vmem, size = 0x12000, scoped, tag = 'internal scratch']
  #allocation2 [shape = 'f32[1,128]{1,0:T(1,128)}', space=vmem, size = 0x200, scoped, tag = 'scratch operand']
  %s0 = inlined_call_operand.vmem [shape: f32[3,8], index: 0, kind: input, shape index: {}]
  %s1 = inlined_call_operand.vmem [shape: s8[1,8], index: 1, kind: input, shape index: {}]
  %s2 = inlined_call_operand.vmem [shape: f32[3,1], index: 2, kind: input, shape index: {}]
  %s3 = inlined_call_operand.hbm [shape: f32[1,1], index: 3, kind: output, shape index: {}]
  %s4 = sld [smem:[#allocation0]]
  $region30: #{tpu_custom_call.1} parent=0
    _
  %s6 = ssub.s32 1, %s4
  %s7 = scalar_select 0, %s6, %s4
  $region1: #{tpu_custom_call.1} parent=0
    #allocation3 [shape = 'u8[512]{0}', space=smem, size = 0x200, scoped, tag = 'output window, operand 0, single buffered']
    #allocation4 [shape = 's32[1]{0}', space=sflag, size = 0x4, scoped, tag = 'scoped memory for tpu_custom_call.1']
    %8 = vsyncpa [#allocation4], 0
    // Predicated region
    $region2: #{tpu_custom_call.1} parent=1 // pred_check
      _
    $region3: #{tpu_custom_call.1} parent=1 // pred_check_branch
      %10 = sbr.rel (0) target = $region5
    $region4: #{tpu_custom_call.1} parent=1 // pred_region
      %s11 = sadd.s32 0, 0
      %p12 = scmp.lt.s32.totalorder %s11, 0
      %s13 = scalar_select %p12, %s11, 0
      %p14 = scmp.lt.s32.totalorder %s13, 0
      %s15 = scalar_select %p14, %s13, 0
      %s16 = smul.addr %s15, 4
      %s17 = scalar_lea.vmem %s0, %s16
      %s18 = sadd.s32 0, 0
      %p19 = scmp.lt.s32.totalorder %s18, 0
      %s20 = scalar_select %p19, %s18, 0
    $region5: #{tpu_custom_call.1} parent=1 // pred_fallthru
      _
    // Predicated region
    $region6: #{tpu_custom_call.1} parent=1 // pred_check
      _
    $region7: #{tpu_custom_call.1} parent=1 // pred_check_branch
      %22 = sbr.rel (0) target = $region9
    $region8: #{tpu_custom_call.1} parent=1 // pred_region
      %s23 = sadd.s32 0, 0
      %p24 = scmp.lt.s32.totalorder %s23, 0
      %s25 = scalar_select %p24, %s23, 0
      %p26 = scmp.lt.s32.totalorder %s25, 0
      %s27 = scalar_select %p26, %s25, 0
      %s28 = scalar_lea.vmem %s1, %s27
      %s29 = sadd.s32 0, 0
      %p30 = scmp.lt.s32.totalorder %s29, 0
      %s31 = scalar_select %p30, %s29, 0
    $region9: #{tpu_custom_call.1} parent=1 // pred_fallthru
      _
    // Predicated region
    $region10: #{tpu_custom_call.1} parent=1 // pred_check
      _
    $region11: #{tpu_custom_call.1} parent=1 // pred_check_branch
      %33 = sbr.rel (0) target = $region13
    $region12: #{tpu_custom_call.1} parent=1 // pred_region
      _
    $region13: #{tpu_custom_call.1} parent=1 // pred_fallthru
      _
    %s34 = sadd.s32 0, 0
    %p35 = scmp.lt.s32.totalorder %s34, 0
    %s36 = scalar_select %p35, %s34, 0
    %p37 = scmp.lt.s32.totalorder %s36, 0
    %s38 = scalar_select %p37, %s36, 0
    %s39 = smul.addr %s38, 4
    %s40 = scalar_lea.vmem %s0, %s39
    %s41 = sadd.s32 0, 0
    %p42 = scmp.lt.s32.totalorder %s41, 0
    %s43 = scalar_select %p42, %s41, 0
    %p44 = scmp.lt.s32.totalorder %s43, 0
    %s45 = scalar_select %p44, %s43, 0
    %s46 = scalar_lea.vmem %s1, %s45
    %s47 = sadd.s32 0, 0
    %p48 = scmp.lt.s32.totalorder %s47, 0
    %s49 = scalar_select %p48, %s47, 0
    %p50 = scmp.lt.s32.totalorder %s49, 0
    %s51 = scalar_select %p50, %s49, 0
    %s52 = smul.addr %s51, 4
    %s53 = scalar_lea.vmem %s0, %s52
    %s54 = sadd.s32 0, 0
    %p55 = scmp.lt.s32.totalorder %s54, 0
    %s56 = scalar_select %p55, %s54, 0
    %s57 = sadd.s32 0, 0
    %p58 = scmp.lt.s32.totalorder %s57, 0
    %s59 = scalar_select %p58, %s57, 0
    %p60 = scmp.lt.s32.totalorder %s59, 0
    %s61 = scalar_select %p60, %s59, 0
    %s62 = scalar_lea.vmem %s1, %s61
    %s63 = sadd.s32 0, 0
    %p64 = scmp.lt.s32.totalorder %s63, 0
    %s65 = scalar_select %p64, %s63, 0
    %p66 = scmp.eq.s32.totalorder 0, 0
    // Predicated region
    $region14: #{tpu_custom_call.1} parent=1 // pred_check
      %p67 = pneg %p66
    $region15: #{tpu_custom_call.1} parent=1 // pred_check_branch
      %69 = sbr.rel (%p67) target = $region17
    $region16: #{tpu_custom_call.1} parent=1 // pred_region
      %70 = vst [vmem:[#allocation2] sm:$0x1] 0.0
    $region17: #{tpu_custom_call.1} parent=1 // pred_fallthru
      _
    %s71 = sadd.s32 0, 0
    %s72 = smul.u32 %s71, 128
    %v73 = vlaneseq
    %v74 = vand.u32 %v73, 127
    %v75 = vstv %s72
    %v76 = vadd.s32 %v75, %v74
    %vm77 = vcmp.lt.s32.totalorder %v76, 8
    %v78 = vld [vmem:[%s53] sm:$0x7]
    %v79 = vsel %vm77, 1, 0
    %vm80 = vcmp.eq.s32.totalorder %v79, 1
    %v81 = vsel %vm80, %v78, 0.0
    %v82 = vld [vmem:[%s62] sm:$0x1]
    %v83 = vunpack.c.0.s8 %v82
    %v84 = vld [vmem:[%s2] sm:$0x7]
    %vm85 = vcmask 1042432
    %v86 = vsel %vm85, %v81, -inf
    %v87 = vrot.slane %v86, 4
    %v88 = vmax.f32 %v86, %v87
    %v89 = vrot.slane %v88, 2
    %v90 = vmax.f32 %v88, %v89
    %v91 = vrot.slane %v90, 1
    %v92 = vmax.f32 %v90, %v91
    %v93 = vsub.f32 %v81, %v92
    %v94 = vmul.f32 %v93, 1.442695
    %v95 = vpow.pop %v94
    %v96 = vsel %vm85, %v95, 0.0
    %v97 = vrot.slane %v96, 4
    %v98 = vadd.f32 %v96, %v97
    %v99 = vrot.slane %v98, 2
    %v100 = vadd.f32 %v98, %v99
    %v101 = vrot.slane %v100, 1
    %v102 = vadd.f32 %v100, %v101
    %v103 = vlog2.pop %v102
    %v104 = vmul.f32 %v103, 0.6931472
    %v105 = vsub.f32 %v93, %v104
    %v106 = vrcp.pop %v102
    %v107 = vmul.f32 1.0, %v106
    %v108 = vmul.f32 %v95, %v107
    %v109 = vlaneseq
    %v110 = vshrl.u32 %v109, 7
    %v111 = vlaneseq
    %v112 = vshrl.u32 %v111, 7
    %v113 = vsub.s32 0, %v112
    %v114 = vrot.slane %v83, %v113
    %vm115 = vcmp.eq.s32.totalorder %v110, %v114
    %v116 = vsel %vm115, 1, 0
    %v117 = vcvt.s32.f32 %v116
    %v118 = vsub.f32 1.0, %v108
    %v119 = vmax.f32 %v118, 0.0
    %v120 = vmul.f32 %v119, %v119
    %122 = vset.pattern.permute.xlu0 0
    %123 = vperm.xlu0 %122, %v84
    %v124 = vpop.permute.xlu0 %123
    %v126 = vmul.f32 %v124, %v120
    %v127 = vmul.f32 %v126, %v105
    %v128 = vmul.f32 %v127, %v117
    %v129 = vsel %vm85, %v128, 0.0
    %v130 = vrot.slane %v129, 4
    %v131 = vadd.f32 %v129, %v130
    %v132 = vrot.slane %v131, 2
    %v133 = vadd.f32 %v131, %v132
    %v134 = vrot.slane %v133, 1
    %v135 = vadd.f32 %v133, %v134
    %v136 = vsel %vm77, %v135, 0.0
    %v137 = vld [vmem:[#allocation2] sm:$0x1]
    %v138 = vsub.f32 %v137, %v136
    %139 = vst [vmem:[#allocation2] sm:$0x1] %v138
    // Predicated region
    $region18: #{tpu_custom_call.1} parent=1 // pred_check
      %p140 = pneg %p66
    $region19: #{tpu_custom_call.1} parent=1 // pred_check_branch
      %142 = sbr.rel (%p140) target = $region21
    $region20: #{tpu_custom_call.1} parent=1 // pred_region
      %v143 = vld [vmem:[#allocation2] sm:$0x1]
      %vm144 = vcmask 1040384
      %v145 = vsel %vm144, %v143, 0.0
      %146 = vadd.xlane.f32.xlu0 %v145
      %v147 = vpop.xlane.xlu0 %146
      %v148 = vrot.slane %v147, 4
      %v149 = vadd.f32 %v147, %v148
      %v150 = vrot.slane %v149, 2
      %v151 = vadd.f32 %v149, %v150
      %v152 = vrot.slane %v151, 1
      %v153 = vadd.f32 %v151, %v152
      %s154 = vtos %v153
      %s155 = scalar_lea.smem [#allocation3], 0
      %156 = sst [smem:[%s155]] %s154
    $region21: #{tpu_custom_call.1} parent=1 // pred_fallthru
      _
    // Predicated region
    $region22: #{tpu_custom_call.1} parent=1 // pred_check
      _
    $region23: #{tpu_custom_call.1} parent=1 // pred_check_branch
      %158 = sbr.rel (0) target = $region25
    $region24: #{tpu_custom_call.1} parent=1 // pred_region
      %s160 = ssub.s32 16, 16
      %161 = vsyncadd [#allocation4], %s160
      %164 = dma.smem_to_hbm [#allocation3], 16, %s3, [#allocation4]
    $region25: #{tpu_custom_call.1} parent=1 // pred_fallthru
      _
    // Predicated region
    $region26: #{tpu_custom_call.1} parent=1 // pred_check
      _
    $region27: #{tpu_custom_call.1} parent=1 // pred_check_branch
      %166 = sbr.rel (0) target = $region29
    $region28: #{tpu_custom_call.1} parent=1 // pred_region
      %167 = dma.done [#allocation4], 16
    $region29: #{tpu_custom_call.1} parent=1 // pred_fallthru
      _
    %168 = sfence
    %169 = vsyncpa [#allocation4], 1

</llo_original>
